<compile_context>
chip_gen: v7x
topology: tpu7x:2x2x1
jax: 0.10.0
libtpu: 0.0.40
codegen_flags: <defaults>
</compile_context>

<pallas_src>
import functools

import jax
import jax.numpy as jnp
from jax.experimental import pallas as pl
from jax.experimental.pallas import tpu as pltpu


def pic_kernel(h_img, x_ref, w_ref, b_ref, o_ref):
    """One grid step = a block of whole images, flattened to rows.

    x_ref: (R, W*Cin)    activations in native dtype (cast to the matmul dtype in-kernel)
    w_ref: (W*Cin, 3*P)  folded banded weights, lane-padded per row-offset slab (resident)
    b_ref: (3, P)        bias rows [top, interior, bottom], f32, lane-padded (resident)
    o_ref: (R, P)        sigmoid output, lane-padded
    """
    r_rows, p = o_ref.shape

    # Single fused MXU matmul: all 3 row taps x all W column taps x Cout at once.
    x = x_ref[...].astype(w_ref.dtype)            # in-kernel cast, hidden under MXU/DMA
    z = jnp.dot(x, w_ref[...], preferred_element_type=jnp.float32)
    z_up, z_mid, z_dn = z[:, :p], z[:, p:2 * p], z[:, 2 * p:3 * p]   # 128-lane aligned

    # Row index within each image on a single lane column; where() broadcasts across lanes.
    h = jax.lax.broadcasted_iota(jnp.int32, (r_rows, 1), 0) % h_img
    is_top = h == 0
    is_bot = h == h_img - 1

    # out[r] += z_up[r-1] (zero at image row 0); out[r] += z_dn[r+1] (zero at row H-1).
    # Wrap-around rows are always masked because every block holds whole images.
    from_above = jnp.where(is_top, 0.0, pltpu.roll(z_up, 1, axis=0))
    from_below = jnp.where(is_bot, 0.0, pltpu.roll(z_dn, r_rows - 1, axis=0))

    b3 = b_ref[...]
    bias = jnp.where(is_top, b3[0:1, :], jnp.where(is_bot, b3[2:3, :], b3[1:2, :]))

    acc = z_mid + from_above + from_below + bias
    o_ref[...] = jax.nn.sigmoid(acc).astype(o_ref.dtype)


def fold_params(w1, b1, wf, bf, H, W, lane=128):
    """Fold (1x1 conv -> pad/shift) x9 + final 1x1 conv into banded weights + bias rows.

    w1: (9, Cin, Hd), b1: (9, 1, Hd), wf: (9, Hd, Cout), bf: (1, Cout)
    Returns:
      wcat  (W*Cin, 3*P)  banded folded weights, per-row-offset slabs lane-padded to P
      bias3 (3, P)        [top, interior, bottom] rows of the border-masked bias map
      P                   W*Cout rounded up to a multiple of `lane`
    """
    Cin = w1.shape[1]
    Cout = wf.shape[2]
    WCo = W * Cout
    P = ((WCo + lane - 1) // lane) * lane

    # Per-offset folded taps, indexed [i, j] (pad top = i, pad left = j).
    w_tap = jnp.einsum('kcd,kdo->kco', w1, wf).reshape(3, 3, Cin, Cout)
    b_tap = jnp.einsum('kd,kdo->ko', b1[:, 0, :], wf).reshape(3, 3, Cout)

    # Output pixel (r, c) reads source (r + 1 - i, c + 1 - j) (zero outside the image).
    # Column shift dj = 1 - j is folded into a banded (W*Cin, W*Cout) matrix; one matrix per
    # row offset di = 1 - i, lane-padded and concatenated along the output dim (-1, 0, +1).
    slabs = []
    for di in (-1, 0, 1):
        i = 1 - di
        m = jnp.zeros((W, Cin, W, Cout), jnp.float32)
        for dj in (-1, 0, 1):
            j = 1 - dj
            band = jnp.eye(W, W, k=-dj, dtype=jnp.float32)   # [p, c] = 1 iff p = c + dj
            m = m + jnp.einsum('pc,ko->pkco', band, w_tap[i, j])
        m = m.reshape(W * Cin, WCo)
        slabs.append(jnp.pad(m, ((0, 0), (0, P - WCo))))
    wcat = jnp.concatenate(slabs, axis=1)                     # (W*Cin, 3*P)

    # Bias map: each offset contributes its folded bias only where its source pixel is in
    # bounds (padding came *after* the 1x1 conv), plus the final conv bias.  All interior
    # rows (0 < r < H-1) are identical, so only 3 distinct rows are kept.
    r = jnp.arange(H)[:, None, None]
    c = jnp.arange(W)[None, :, None]
    bias = jnp.zeros((H, W, Cout), jnp.float32) + bf[0]
    for i in range(3):
        for j in range(3):
            in_bounds = ((r + 1 - i >= 0) & (r + 1 - i < H) &
                         (c + 1 - j >= 0) & (c + 1 - j < W))
            bias = bias + jnp.where(in_bounds, 1.0, 0.0) * b_tap[i, j]
    bias = bias.reshape(H, WCo)
    bias3 = jnp.stack([bias[0], bias[min(1, H - 1)], bias[H - 1]], axis=0)
    bias3 = jnp.pad(bias3, ((0, 0), (0, P - WCo)))
    return wcat, bias3, P


def _vmem_capacity_bytes():
    try:
        return int(pltpu.get_tpu_info().vmem_capacity_bytes)
    except Exception:
        return 128 * 1024 * 1024        # v5e/v6e default if the query is unavailable


def make_pic(w1, b1, wf, bf, H, W, *, matmul_dtype=jnp.bfloat16,
             out_dtype=jnp.bfloat16, block_images=None):
    """Fold parameters once and return a jitted forward(x_nhwc) -> (N, H, W, Cout)."""
    Cin = w1.shape[1]
    Cout = wf.shape[2]
    WCin, WCo = W * Cin, W * Cout

    wcat, bias3, P = fold_params(w1, b1, wf, bf, H, W)
    wcat = wcat.astype(matmul_dtype)     # pass matmul_dtype=float32 if fold precision matters

    # Generation-aware tiling targets (queried once at build time).
    vmem_cap = _vmem_capacity_bytes()
    small_vmem = vmem_cap <= 64 * 1024 * 1024      # v7x-class: 64 MiB VMEM per TensorCore
    row_target = 512 if small_vmem else 1024       # flattened rows per block (v5e/v6e: bigger)
    vmem_budget = (24 if small_vmem else 64) * 1024 * 1024
    vmem_limit = int(min(vmem_budget, (3 * vmem_cap) // 4))
    want_steps = 4 if small_vmem else 2            # v7x: >=4 steps for 2-TC sharding + pipeline

    resident_bytes = (wcat.size * wcat.dtype.itemsize
                      + bias3.size * bias3.dtype.itemsize)

    def _pick_block_images(N, in_itemsize, out_itemsize):
        def block_bytes(d):
            rows = d * H
            # double-buffered input + output blocks, plus resident weights/bias (x2 margin)
            return 2 * rows * (WCin * in_itemsize + P * out_itemsize) + 2 * resident_bytes

        def ok(d, min_steps):
            rows = d * H
            return (N % d == 0 and rows % 8 == 0 and rows <= row_target
                    and N // d >= min_steps and block_bytes(d) <= vmem_budget)

        for min_steps in (min(want_steps, N), min(2, N), 1):
            cands = [d for d in range(1, N + 1) if ok(d, min_steps)]
            if cands:
                # Prefer 16-aligned row blocks (bf16 sublane packing), then the largest.
                return max(cands, key=lambda d: ((d * H) % 16 == 0, d))
        return N   # whole-array block (block shape == array shape is always legal)

    @jax.jit
    def forward(x_nhwc):
        N = x_nhwc.shape[0]
        assert x_nhwc.shape == (N, H, W, Cin)

        if block_images is None:
            bi = _pick_block_images(N, jnp.dtype(x_nhwc.dtype).itemsize,
                                    jnp.dtype(out_dtype).itemsize)
        else:
            bi = block_images
            assert N % bi == 0
            assert bi == N or (bi * H) % 8 == 0, (
                "block rows must be a multiple of 8 unless the block covers the whole array")
        R = bi * H                # whole images per block => image borders == block borders
        assert R % H == 0

        x2d = x_nhwc.reshape(N * H, WCin)   # native dtype; matmul cast happens in-kernel

        out2d = pl.pallas_call(
            functools.partial(pic_kernel, H),
            out_shape=jax.ShapeDtypeStruct((N * H, P), out_dtype),
            grid=(N // bi,),
            in_specs=[
                pl.BlockSpec((R, WCin), lambda n: (n, 0)),       # pipelined activations
                pl.BlockSpec((WCin, 3 * P), lambda n: (0, 0)),   # resident folded weights
                pl.BlockSpec((3, P), lambda n: (0, 0)),          # resident bias rows
            ],
            out_specs=pl.BlockSpec((R, P), lambda n: (n, 0)),
            compiler_params=pltpu.CompilerParams(
                dimension_semantics=("parallel",),
                vmem_limit_bytes=vmem_limit),
        )(x2d, wcat, bias3)

        # Strip the lane padding outside the kernel (keeps in-kernel stores unmasked).
        return out2d[:, :WCo].reshape(N, H, W, Cout)

    return forward


def ref_forward(x_nhwc, w1, b1, wf, bf):
    # Faithful pure-JAX emulation of the PyTorch module: 9 x (1x1 conv -> ZeroPad2d),
    # channel concat, crop, final 1x1 conv, sigmoid.  HIGHEST precision => near-exact.
    N, H, W, Cin = x_nhwc.shape
    Hd = w1.shape[2]
    hp = jax.lax.Precision.HIGHEST
    pieces = []
    for i in range(3):
        for j in range(3):
            ij = i * 3 + j
            y = jnp.einsum('nhwc,cd->nhwd', x_nhwc, w1[ij], precision=hp) + b1[ij]
            padded = jnp.zeros((N, H + 2, W + 2, Hd), jnp.float32)
            padded = padded.at[:, i:i + H, j:j + W, :].set(y)
            pieces.append(padded[:, 1:-1, 1:-1, :])
    cat = jnp.concatenate(pieces, axis=-1)                    # (N, H, W, 9*Hd)
    wf_full = wf.reshape(9 * Hd, -1)
    out = jnp.einsum('nhwc,cd->nhwd', cat, wf_full, precision=hp) + bf[0]
    return jax.nn.sigmoid(out)


if __name__ == "__main__":
    key = jax.random.PRNGKey(0)
    N, Cin, H, W = 2, 4, 16, 16
    Hd, Cout = 8, 4                       # hidden_channels, out_channels
    # kernel_size only feeds an oddness assert in the PyTorch module; otherwise unused.
    k = jax.random.split(key, 6)

    x_nchw = jax.random.normal(k[0], (N, Cin, H, W), jnp.float32)

    # Conv2d-style uniform init (bound 1/sqrt(fan_in)).
    b1x1 = 1.0 / (Cin ** 0.5)
    w1 = jax.random.uniform(k[1], (9, Cin, Hd), jnp.float32, -b1x1, b1x1)
    b1 = jax.random.uniform(k[2], (9, 1, Hd), jnp.float32, -b1x1, b1x1)
    bfin = 1.0 / ((9 * Hd) ** 0.5)
    wf = jax.random.uniform(k[3], (9, Hd, Cout), jnp.float32, -bfin, bfin)
    bf = jax.random.uniform(k[4], (1, Cout), jnp.float32, -bfin, bfin)

    x_nhwc = jnp.transpose(x_nchw, (0, 2, 3, 1))              # NCHW -> NHWC

    ref = ref_forward(x_nhwc, w1, b1, wf, bf)

    # f32 weights/output, one image per grid step -> grid=(2,): exercises the pipelined grid
    # with resident weight/bias blocks.  Tolerance covers MXU default precision + the
    # weight-fold reassociation (structural bugs produce errors >> 2e-2 post-sigmoid).
    pic_f32 = make_pic(w1, b1, wf, bf, H, W, matmul_dtype=jnp.float32,
                       out_dtype=jnp.float32, block_images=1)
    out_f32 = jax.block_until_ready(pic_f32(x_nhwc))
    assert out_f32.shape == (N, H, W, Cout)
    assert jnp.allclose(out_f32, ref, atol=2e-2, rtol=2e-2)

    # Default path: bf16 matmul operands + bf16 output, generation-aware auto block sizing.
    pic_bf16 = make_pic(w1, b1, wf, bf, H, W)
    out_bf16 = jax.block_until_ready(pic_bf16(x_nhwc))
    assert out_bf16.shape == (N, H, W, Cout)
    assert out_bf16.dtype == jnp.bfloat16
    assert jnp.allclose(out_bf16.astype(jnp.float32), ref, atol=2e-2, rtol=2e-2)

    print("KERNEL_OK")
</pallas_src>

<mosaic_0001>
module attributes {stable_mosaic.version = 11 : i64} {
  func.func @pic_kernel(%arg0: i32, %arg1: memref<16x64xf32, #tpu.memory_space<vmem>>, %arg2: memref<64x384xf32, #tpu.memory_space<vmem>>, %arg3: memref<3x128xf32, #tpu.memory_space<vmem>>, %arg4: memref<16x128xf32, #tpu.memory_space<vmem>>) attributes {dimension_semantics = [#tpu.dimension_semantics<parallel>], iteration_bounds = array<i64: 2>, scalar_prefetch = 0 : i64, scratch_operands = 0 : i64, tpu.core_type = #tpu.core_type<tc>, window_params = [{transform_indices = @transform_0, window_bounds = array<i64: 16, 64>}, {pipeline_mode = #tpu.pipeline_mode<synchronous>, transform_indices = @transform_1, window_bounds = array<i64: 64, 384>}, {pipeline_mode = #tpu.pipeline_mode<synchronous>, transform_indices = @transform_2, window_bounds = array<i64: 3, 128>}, {transform_indices = @transform_3, window_bounds = array<i64: 16, 128>}]} {
    %c0 = arith.constant 0 : index
    %c0_0 = arith.constant 0 : index
    %0 = vector.load %arg1[%c0, %c0_0] : memref<16x64xf32, #tpu.memory_space<vmem>>, vector<16x64xf32>
    %c0_1 = arith.constant 0 : index
    %c0_2 = arith.constant 0 : index
    %1 = vector.load %arg2[%c0_1, %c0_2] : memref<64x384xf32, #tpu.memory_space<vmem>>, vector<64x384xf32>
    %cst = arith.constant dense<0.000000e+00> : vector<16x384xf32>
    %2 = tpu.matmul %0, %1, %cst {dimension_numbers = #tpu.dot_dimension_numbers<[1], [0], [0], [1], [0, 0, 1, 1], [], []>} : vector<16x64xf32>, vector<64x384xf32>, vector<16x384xf32> -> vector<16x384xf32>
    %3 = vector.extract_strided_slice %2 {offsets = [0, 0], sizes = [16, 128], strides = [1, 1]} : vector<16x384xf32> to vector<16x128xf32>
    %4 = vector.extract_strided_slice %2 {offsets = [0, 128], sizes = [16, 128], strides = [1, 1]} : vector<16x384xf32> to vector<16x128xf32>
    %5 = vector.extract_strided_slice %2 {offsets = [0, 256], sizes = [16, 128], strides = [1, 1]} : vector<16x384xf32> to vector<16x128xf32>
    %6 = tpu.iota {dimensions = array<i32: 0>} : vector<16x1xi32>
    %c16_i32 = arith.constant 16 : i32
    %c0_i32 = arith.constant 0 : i32
    %7 = arith.cmpi eq, %c16_i32, %c0_i32 : i32
    %c1_i32 = arith.constant 1 : i32
    %8 = arith.select %7, %c1_i32, %c16_i32 : i32
    %9 = vector.broadcast %8 : i32 to vector<16x1xi32>
    %10 = arith.remsi %6, %9 : vector<16x1xi32>
    %c0_i32_3 = arith.constant 0 : i32
    %11 = vector.broadcast %c0_i32_3 : i32 to vector<16x1xi32>
    %12 = arith.cmpi ne, %10, %11 : vector<16x1xi32>
    %c0_i32_4 = arith.constant 0 : i32
    %13 = vector.broadcast %c0_i32_4 : i32 to vector<16x1xi32>
    %14 = arith.cmpi slt, %10, %13 : vector<16x1xi32>
    %c0_i32_5 = arith.constant 0 : i32
    %15 = arith.cmpi slt, %8, %c0_i32_5 : i32
    %16 = vector.broadcast %15 : i1 to vector<16x1xi1>
    %17 = vector.broadcast %16 : vector<16x1xi1> to vector<16x1xi1>
    %18 = arith.xori %14, %17 : vector<16x1xi1>
    %19 = arith.andi %18, %12 : vector<16x1xi1>
    %20 = vector.broadcast %8 : i32 to vector<16x1xi32>
    %21 = arith.addi %10, %20 : vector<16x1xi32>
    %22 = arith.select %19, %21, %10 : vector<16x1xi1>, vector<16x1xi32>
    %c0_i32_6 = arith.constant 0 : i32
    %23 = vector.broadcast %c0_i32_6 : i32 to vector<16x1xi32>
    %24 = arith.cmpi eq, %22, %23 : vector<16x1xi32>
    %c15_i32 = arith.constant 15 : i32
    %25 = vector.broadcast %c15_i32 : i32 to vector<16x1xi32>
    %26 = arith.cmpi eq, %22, %25 : vector<16x1xi32>
    %c1_i32_7 = arith.constant 1 : i32
    %27 = tpu.dynamic_rotate %3 by %c1_i32_7 dim 0 : vector<16x128xf32>, i32 -> vector<16x128xf32>
    %cst_8 = arith.constant 0.000000e+00 : f32
    %28 = vector.shape_cast %24 : vector<16x1xi1> to vector<16x1xi1>
    %29 = vector.broadcast %28 : vector<16x1xi1> to vector<16x128xi1>
    %30 = vector.broadcast %cst_8 : f32 to vector<16x128xf32>
    %31 = arith.select %29, %30, %27 : vector<16x128xi1>, vector<16x128xf32>
    %c15_i32_9 = arith.constant 15 : i32
    %32 = tpu.dynamic_rotate %5 by %c15_i32_9 dim 0 : vector<16x128xf32>, i32 -> vector<16x128xf32>
    %cst_10 = arith.constant 0.000000e+00 : f32
    %33 = vector.shape_cast %26 : vector<16x1xi1> to vector<16x1xi1>
    %34 = vector.broadcast %33 : vector<16x1xi1> to vector<16x128xi1>
    %35 = vector.broadcast %cst_10 : f32 to vector<16x128xf32>
    %36 = arith.select %34, %35, %32 : vector<16x128xi1>, vector<16x128xf32>
    %c0_11 = arith.constant 0 : index
    %c0_12 = arith.constant 0 : index
    %37 = vector.load %arg3[%c0_11, %c0_12] : memref<3x128xf32, #tpu.memory_space<vmem>>, vector<3x128xf32>
    %38 = vector.extract_strided_slice %37 {offsets = [0, 0], sizes = [1, 128], strides = [1, 1]} : vector<3x128xf32> to vector<1x128xf32>
    %39 = vector.extract_strided_slice %37 {offsets = [2, 0], sizes = [1, 128], strides = [1, 1]} : vector<3x128xf32> to vector<1x128xf32>
    %40 = vector.extract_strided_slice %37 {offsets = [1, 0], sizes = [1, 128], strides = [1, 1]} : vector<3x128xf32> to vector<1x128xf32>
    %41 = vector.shape_cast %26 : vector<16x1xi1> to vector<16x1xi1>
    %42 = vector.broadcast %41 : vector<16x1xi1> to vector<16x128xi1>
    %43 = vector.shape_cast %39 : vector<1x128xf32> to vector<1x128xf32>
    %44 = vector.broadcast %43 : vector<1x128xf32> to vector<16x128xf32>
    %45 = vector.shape_cast %40 : vector<1x128xf32> to vector<1x128xf32>
    %46 = vector.broadcast %45 : vector<1x128xf32> to vector<16x128xf32>
    %47 = arith.select %42, %44, %46 : vector<16x128xi1>, vector<16x128xf32>
    %48 = vector.shape_cast %24 : vector<16x1xi1> to vector<16x1xi1>
    %49 = vector.broadcast %48 : vector<16x1xi1> to vector<16x128xi1>
    %50 = vector.shape_cast %38 : vector<1x128xf32> to vector<1x128xf32>
    %51 = vector.broadcast %50 : vector<1x128xf32> to vector<16x128xf32>
    %52 = arith.select %49, %51, %47 : vector<16x128xi1>, vector<16x128xf32>
    %53 = arith.addf %4, %31 : vector<16x128xf32>
    %54 = arith.addf %53, %36 : vector<16x128xf32>
    %55 = arith.addf %54, %52 : vector<16x128xf32>
    %56 = arith.negf %55 : vector<16x128xf32>
    %57 = math.exp %56 : vector<16x128xf32>
    %cst_13 = arith.constant 1.000000e+00 : f32
    %58 = vector.broadcast %cst_13 : f32 to vector<16x128xf32>
    %59 = arith.addf %58, %57 : vector<16x128xf32>
    %60 = arith.divf %58, %59 : vector<16x128xf32>
    %c0_14 = arith.constant 0 : index
    %c0_15 = arith.constant 0 : index
    %61 = vector.load %arg4[%c0_14, %c0_15] : memref<16x128xf32, #tpu.memory_space<vmem>>, vector<16x128xf32>
    tpu.vector_store %arg4[%c0_14, %c0_15], %60 {strides = array<i32>} : memref<16x128xf32, #tpu.memory_space<vmem>>, vector<16x128xf32>,
    return
  }
  func.func @transform_0(%arg0: i32) -> (i32, i32) {
    %c0_i32 = arith.constant 0 : i32
    %c0_i32_0 = arith.constant 0 : i32
    return %arg0, %c0_i32 : i32, i32
  }
  func.func @transform_1(%arg0: i32) -> (i32, i32) {
    %c0_i32 = arith.constant 0 : i32
    %c0_i32_0 = arith.constant 0 : i32
    %c0_i32_1 = arith.constant 0 : i32
    return %c0_i32, %c0_i32_0 : i32, i32
  }
  func.func @transform_2(%arg0: i32) -> (i32, i32) {
    %c0_i32 = arith.constant 0 : i32
    %c0_i32_0 = arith.constant 0 : i32
    %c0_i32_1 = arith.constant 0 : i32
    return %c0_i32, %c0_i32_0 : i32, i32
  }
  func.func @transform_3(%arg0: i32) -> (i32, i32) {
    %c0_i32 = arith.constant 0 : i32
    %c0_i32_0 = arith.constant 0 : i32
    return %arg0, %c0_i32 : i32, i32
  }
}

</mosaic_0001>

<llo_original>
// kernel: forward.1
$region0: #{forward.1}
  #allocation0 [shape = 'u32[]', space=smem, size = 0x4, offset = 0x4, fixed_abs, tag = 'smem constant byte address 0x4 - core index']
  #allocation1 [shape = 'u32[144,128]{1,0:T(1,128)}', space=vmem, size = 0x12000, scoped, tag = 'internal scratch']
  %s0 = inlined_call_operand.hbm [shape: f32[32,64], index: 0, kind: input, shape index: {}]
  %s1 = inlined_call_operand.hbm [shape: f32[64,384], index: 1, kind: input, shape index: {}]
  %s2 = inlined_call_operand.hbm [shape: f32[3,128], index: 2, kind: input, shape index: {}]
  %s3 = inlined_call_operand.hbm [shape: f32[32,128], index: 3, kind: output, shape index: {}]
  %s4 = sld [smem:[#allocation0]]
  $region57: #{forward.1} parent=0
    _
  %s6 = ssub.s32 1, %s4
  %s7 = scalar_select 0, %s6, %s4
  $region1: #{forward.1} parent=0
    #allocation2 [shape = 'u8[16384]{0}', space=vmem, size = 0x4000, scoped, tag = 'input window, operand 0']
    #allocation3 [shape = 's32[2]{0}', space=sflag, size = 0x8, scoped, tag = 'scoped memory for forward.1']
    #allocation4 [shape = 's32[2]{0}', space=sflag, size = 0x8, scoped, tag = 'scoped memory for forward.1']
    #allocation5 [shape = 'u8[98304]{0}', space=vmem, size = 0x18000, scoped, tag = 'input window, operand 1, single buffered']
    #allocation6 [shape = 's32[1]{0}', space=sflag, size = 0x4, scoped, tag = 'scoped memory for forward.1']
    #allocation7 [shape = 'u8[2048]{0}', space=vmem, size = 0x800, scoped, tag = 'input window, operand 2, single buffered']
    #allocation8 [shape = 'u8[16384]{0}', space=vmem, size = 0x4000, scoped, tag = 'output window, operand 0']
    %8 = vsyncpa [#allocation3], 0
    %s9 = scalar_lea.sflag [#allocation3], 1
    %10 = vsyncpa %s9, 0
    %11 = vsyncpa [#allocation6], 0
    %12 = vsyncpa [#allocation4], 0
    %s13 = scalar_lea.sflag [#allocation4], 1
    %14 = vsyncpa %s13, 0
    loop: start=0, step=1, limit=4
    $region2: #{forward.1} parent=1 // loop_pre_header
      _
    $region3: #{forward.1} parent=1 // loop_header
      %s16 = sphi 0, %s20
      %p17 = scmp.ge.s32.totalorder %s16, 4
      %s26 = sphi 0, %s28
      %s29 = sphi 0, %s26
      %s30 = sphi 0, %s29
      %s46 = sphi 0, %s30
      %s50 = sphi 0, %s50
      %s52 = sphi 0, %s50
      %s53 = sphi 0, %s52
      %s67 = sphi 0, %s53
      %s71 = sphi 0, %s71
      %s73 = sphi 0, %s71
      %s74 = sphi 0, %s73
      %s88 = sphi 0, %s74
      %s94 = sphi 0, %s96
      %s97 = sphi 0, %s94
      %s98 = sphi 0, %s97
      %s114 = sphi 0, %s98
    $region4: #{forward.1} parent=1 // loop_header_branch
      %19 = sbr.rel (%p17) target = $region8
    $region5: #{forward.1} parent=1 // loop_body
      %s21 = ssub.s32 %s16, 1
      %s22 = ssub.s32 %s16, 2
      %s23 = sadd.s32 %s16, 1
      %s24 = ssub.s32 %s16, %s23
      %p25 = scmp.eq.s32.totalorder %s24, 0
      %s27 = sadd.s32 %s26, 1
      %s28 = scalar_select %p25, %s26, %s27
      %p31 = pneg %p25
      %p32 = scmp.eq.s32.totalorder %s16, 1
      %p33 = por %p31, %p32
      %p34 = scmp.ne.s32.totalorder %s26, %s29
      %p35 = scmp.eq.s32.totalorder %s16, 0
      %p36 = por %p34, %p35
      %p37 = scmp.ne.s32.totalorder %s26, %s29
      %p38 = scmp.eq.s32.totalorder %s21, 1
      %p39 = por %p37, %p38
      %p40 = scmp.ne.s32.totalorder %s29, %s30
      %p41 = scmp.eq.s32.totalorder %s21, 0
      %p42 = por %p40, %p41
      %p43 = scmp.ne.s32.totalorder %s29, %s30
      %p44 = scmp.eq.s32.totalorder %s22, 1
      %p45 = por %p43, %p44
      %p47 = scmp.ne.s32.totalorder %s30, %s46
      %p48 = scmp.eq.s32.totalorder %s22, 0
      %p49 = por %p47, %p48
      %s51 = sadd.s32 %s50, 1
      %p54 = scmp.eq.s32.totalorder %s16, 1
      %p55 = scmp.ne.s32.totalorder %s50, %s52
      %p56 = scmp.eq.s32.totalorder %s16, 0
      %p57 = por %p55, %p56
      %p58 = scmp.ne.s32.totalorder %s50, %s52
      %p59 = scmp.eq.s32.totalorder %s21, 1
      %p60 = por %p58, %p59
      %p61 = scmp.ne.s32.totalorder %s52, %s53
      %p62 = scmp.eq.s32.totalorder %s21, 0
      %p63 = por %p61, %p62
      %p64 = scmp.ne.s32.totalorder %s52, %s53
      %p65 = scmp.eq.s32.totalorder %s22, 1
      %p66 = por %p64, %p65
      %p68 = scmp.ne.s32.totalorder %s53, %s67
      %p69 = scmp.eq.s32.totalorder %s22, 0
      %p70 = por %p68, %p69
      %s72 = sadd.s32 %s71, 1
      %p75 = scmp.eq.s32.totalorder %s16, 1
      %p76 = scmp.ne.s32.totalorder %s71, %s73
      %p77 = scmp.eq.s32.totalorder %s16, 0
      %p78 = por %p76, %p77
      %p79 = scmp.ne.s32.totalorder %s71, %s73
      %p80 = scmp.eq.s32.totalorder %s21, 1
      %p81 = por %p79, %p80
      %p82 = scmp.ne.s32.totalorder %s73, %s74
      %p83 = scmp.eq.s32.totalorder %s21, 0
      %p84 = por %p82, %p83
      %p85 = scmp.ne.s32.totalorder %s73, %s74
      %p86 = scmp.eq.s32.totalorder %s22, 1
      %p87 = por %p85, %p86
      %p89 = scmp.ne.s32.totalorder %s74, %s88
      %p90 = scmp.eq.s32.totalorder %s22, 0
      %p91 = por %p89, %p90
      %s92 = ssub.s32 %s16, %s23
      %p93 = scmp.eq.s32.totalorder %s92, 0
      %s95 = sadd.s32 %s94, 1
      %s96 = scalar_select %p93, %s94, %s95
      %p99 = pneg %p93
      %p100 = scmp.eq.s32.totalorder %s16, 1
      %p101 = por %p99, %p100
      %p102 = scmp.ne.s32.totalorder %s94, %s97
      %p103 = scmp.eq.s32.totalorder %s16, 0
      %p104 = por %p102, %p103
      %p105 = scmp.ne.s32.totalorder %s94, %s97
      %p106 = scmp.eq.s32.totalorder %s21, 1
      %p107 = por %p105, %p106
      %p108 = scmp.ne.s32.totalorder %s97, %s98
      %p109 = scmp.eq.s32.totalorder %s21, 0
      %p110 = por %p108, %p109
      %p111 = scmp.ne.s32.totalorder %s97, %s98
      %p112 = scmp.eq.s32.totalorder %s22, 1
      %p113 = por %p111, %p112
      %p115 = scmp.ne.s32.totalorder %s98, %s114
      %p116 = scmp.eq.s32.totalorder %s22, 0
      %p117 = por %p115, %p116
      %p118 = scmp.le.s32.totalorder 1, %s16
      %p119 = scmp.lt.s32.totalorder %s16, 3
      %p120 = pnand %p118, %p119
      %p121 = pneg %p120
      // Predicated region
      $region9: #{forward.1} parent=5 // pred_check
        _
      $region10: #{forward.1} parent=5 // pred_check_branch
        %123 = sbr.rel (%p120) target = $region12
      $region11: #{forward.1} parent=5 // pred_region
        %s124 = ssub.s32 %s16, 1
        // Predicated region
        $region13: #{forward.1} parent=11 // pred_check
          %p125 = pneg %p63
        $region14: #{forward.1} parent=11 // pred_check_branch
          %127 = sbr.rel (%p125) target = $region16
        $region15: #{forward.1} parent=11 // pred_region
          %s129 = ssub.s32 3072, 3072
          %130 = vsyncadd [#allocation6], %s129
          %s131 = sshll.u32 [#allocation5], 4
          %s132 = int_to_ptr.vmem [resolvable:$true] %s131
          %137 = dma.hbm_to_vmem [thread:$0]  %s1, 3072, %s132, [#allocation6], 384, 384, 24
        $region16: #{forward.1} parent=11 // pred_fallthru
          _
        // Predicated region
        $region17: #{forward.1} parent=11 // pred_check
          %p138 = pneg %p84
        $region18: #{forward.1} parent=11 // pred_check_branch
          %140 = sbr.rel (%p138) target = $region20
        $region19: #{forward.1} parent=11 // pred_region
          %s142 = ssub.s32 64, 64
          %143 = vsyncadd [#allocation6], %s142
          %s145 = sshll.u32 [#allocation7], 4
          %s146 = int_to_ptr.vmem [resolvable:$true] %s145
          %148 = dma.hbm_to_vmem [thread:$0]  %s2, 64, %s146, [#allocation6]
        $region20: #{forward.1} parent=11 // pred_fallthru
          _
      $region12: #{forward.1} parent=5 // pred_fallthru
        _
      %p149 = scmp.lt.s32.totalorder %s16, 2
      // Predicated region
      $region21: #{forward.1} parent=5 // pred_check
        %p150 = pneg %p149
      $region22: #{forward.1} parent=5 // pred_check_branch
        %152 = sbr.rel (%p150) target = $region24
      $region23: #{forward.1} parent=5 // pred_region
        // Predicated region
        $region25: #{forward.1} parent=23 // pred_check
          %p153 = pneg %p36
        $region26: #{forward.1} parent=23 // pred_check_branch
          %155 = sbr.rel (%p153) target = $region28
        $region27: #{forward.1} parent=23 // pred_region
          %s156 = sand.u32 %s26, 1
          %s157 = scalar_lea.sflag [#allocation3], %s156
          %s158 = sand.u32 %s26, 1
          %s159 = smul.addr %s158, 16
          %s160 = scalar_lea.vmem [#allocation2], %s159
          %s161 = smul.u32 2, %s16
          %s163 = ssub.s32 256, 256
          %164 = vsyncadd %s157, %s163
          %s165 = smul.addr %s161, 128
          %s166 = scalar_lea.hbm %s0, %s165
          %s167 = sshll.u32 %s160, 4
          %s168 = int_to_ptr.vmem [resolvable:$true] %s167
          %173 = dma.hbm_to_vmem [thread:$0]  %s166, 256, %s168, %s157, 128, 128, 8
        $region28: #{forward.1} parent=23 // pred_fallthru
          _
      $region24: #{forward.1} parent=5 // pred_fallthru
        _
      %p174 = scmp.le.s32.totalorder 1, %s16
      %p175 = scmp.lt.s32.totalorder %s16, 3
      %p176 = pnand %p174, %p175
      %p177 = pneg %p176
      // Predicated region
      $region29: #{forward.1} parent=5 // pred_check
        _
      $region30: #{forward.1} parent=5 // pred_check_branch
        %179 = sbr.rel (%p176) target = $region32
      $region31: #{forward.1} parent=5 // pred_region
        %s180 = ssub.s32 %s16, 1
        %s181 = sand.u32 %s29, 1
        %s182 = scalar_lea.sflag [#allocation3], %s181
        %s183 = sand.u32 %s29, 1
        %s184 = smul.addr %s183, 16
        %s185 = scalar_lea.vmem [#allocation2], %s184
        // Predicated region
        $region33: #{forward.1} parent=31 // pred_check
          %p186 = pneg %p42
        $region34: #{forward.1} parent=31 // pred_check_branch
          %188 = sbr.rel (%p186) target = $region36
        $region35: #{forward.1} parent=31 // pred_region
          %189 = dma.done %s182, 256
        $region36: #{forward.1} parent=31 // pred_fallthru
          _
        // Predicated region
        $region37: #{forward.1} parent=31 // pred_check
          %p190 = pneg %p63
        $region38: #{forward.1} parent=31 // pred_check_branch
          %192 = sbr.rel (%p190) target = $region40
        $region39: #{forward.1} parent=31 // pred_region
          %193 = dma.done [#allocation6], 3072
        $region40: #{forward.1} parent=31 // pred_fallthru
          _
        // Predicated region
        $region41: #{forward.1} parent=31 // pred_check
          %p194 = pneg %p84
        $region42: #{forward.1} parent=31 // pred_check_branch
          %196 = sbr.rel (%p194) target = $region44
        $region43: #{forward.1} parent=31 // pred_region
          %197 = dma.done [#allocation6], 64
        $region44: #{forward.1} parent=31 // pred_fallthru
          _
        %s198 = sand.u32 %s29, 1
        %s199 = scalar_lea.sflag [#allocation3], %s198
        %s200 = sand.u32 %s29, 1
        %s201 = smul.addr %s200, 16
        %s202 = scalar_lea.vmem [#allocation2], %s201
        %p203 = pneg %p42
        %p204 = pneg %p39
        %p205 = pneg %p63
        %p206 = pneg %p60
        %p207 = pneg %p84
        %p208 = pneg %p81
        %p209 = pneg %p110
        %p210 = pneg %p107
        %s211 = sand.u32 %s97, 1
        %s212 = scalar_lea.sflag [#allocation4], %s211
        %s213 = sand.u32 %s97, 1
        %s214 = smul.addr %s213, 16
        %s215 = scalar_lea.vmem [#allocation8], %s214
        %s216 = smul.u32 2, %s21
        %s217 = smul.u32 2, %s21
        %v218 = vld [vmem:[%s185] sm:$0xff]
        %v219 = vld [vmem:[%s185 + $0x8] sm:$0xff]
        %v220 = vld [vmem:[#allocation5] sm:$0xff]
        %v221 = vld [vmem:[#allocation5 + $0x8] sm:$0xff]
        %v222 = vld [vmem:[#allocation5 + $0x10] sm:$0xff]
        %v223 = vld [vmem:[#allocation5 + $0x18] sm:$0xff]
        %v224 = vld [vmem:[#allocation5 + $0x20] sm:$0xff]
        %v225 = vld [vmem:[#allocation5 + $0x28] sm:$0xff]
        %v226 = vld [vmem:[#allocation5 + $0x30] sm:$0xff]
        %v227 = vld [vmem:[#allocation5 + $0x38] sm:$0xff]
        %v228 = vld [vmem:[#allocation5 + $0x40] sm:$0xff]
        %v229 = vld [vmem:[#allocation5 + $0x48] sm:$0xff]
        %v230 = vld [vmem:[#allocation5 + $0x50] sm:$0xff]
        %v231 = vld [vmem:[#allocation5 + $0x58] sm:$0xff]
        %v232 = vld [vmem:[#allocation5 + $0x60] sm:$0xff]
        %v233 = vld [vmem:[#allocation5 + $0x68] sm:$0xff]
        %v234 = vld [vmem:[#allocation5 + $0x70] sm:$0xff]
        %v235 = vld [vmem:[#allocation5 + $0x78] sm:$0xff]
        %v236 = vld [vmem:[#allocation5 + $0x80] sm:$0xff]
        %v237 = vld [vmem:[#allocation5 + $0x88] sm:$0xff]
        %v238 = vld [vmem:[#allocation5 + $0x90] sm:$0xff]
        %v239 = vld [vmem:[#allocation5 + $0x98] sm:$0xff]
        %v240 = vld [vmem:[#allocation5 + $0xa0] sm:$0xff]
        %v241 = vld [vmem:[#allocation5 + $0xa8] sm:$0xff]
        %v242 = vld [vmem:[#allocation5 + $0xb0] sm:$0xff]
        %v243 = vld [vmem:[#allocation5 + $0xb8] sm:$0xff]
        %vm244 = vcmask 523264
        %v246 = vsel %vm244, %v218, 0
        %v249 = vsel %vm244, %v219, 0
        %251 = vmatprep.subr.mxu0 %v221
        %252 = vmatpush1.msra.mxu0 %v220
        %253 = vmatprep.subr.mxu0 %v224
        %254 = vmatpush1.msra.mxu0 %v223
        %255 = vmatprep.subr.mxu0 %v227
        %256 = vmatpush1.msra.mxu0 %v226
        %257 = vmatprep.subr.mxu0 %v230
        %258 = vmatpush1.msra.mxu0 %v229
        %259 = vmatprep.subr.mxu0 %v233
        %260 = vmatpush1.msra.mxu0 %v232
        %261 = vmatprep.subr.mxu0 %v236
        %262 = vmatpush1.msra.mxu0 %v235
        %263 = vmatprep.subr.mxu0 %v239
        %264 = vmatpush1.msra.mxu0 %v238
        %265 = vmatprep.subr.mxu0 %v242
        %266 = vmatpush1.msra.mxu0 %v241
        %267 = vmatprep.subr.mxu0 0.0
        %268 = vmatpush1.msra.mxu0 0.0
        %269 = vmatprep.subr.mxu0 0.0
        %270 = vmatpush1.msra.mxu0 0.0
        %271 = vmatprep.subr.mxu0 0.0
        %272 = vmatpush1.msra.mxu0 0.0
        %273 = vmatprep.subr.mxu0 0.0
        %274 = vmatpush1.msra.mxu0 0.0
        %275 = vmatprep.subr.mxu0 0.0
        %276 = vmatpush1.msra.mxu0 0.0
        %277 = vmatprep.subr.mxu0 0.0
        %278 = vmatpush1.msra.mxu0 0.0
        %279 = vmatprep.subr.mxu0 0.0
        %280 = vmatpush1.msra.mxu0 0.0
        %281 = vmatprep.subr.mxu0 0.0
        %282 = vmatpush1.msra.mxu0 0.0
        %283 = vmatprep.subr.mxu0 0.0
        %284 = vmatpush1.msra.mxu0 0.0
        %285 = vmatprep.subr.mxu0 0.0
        %286 = vmatpush1.msra.mxu0 0.0
        %287 = vmatprep.subr.mxu0 0.0
        %288 = vmatpush1.msra.mxu0 0.0
        %289 = vmatprep.subr.mxu0 0.0
        %290 = vmatpush1.msra.mxu0 0.0
        %291 = vmatprep.subr.mxu0 0.0
        %292 = vmatpush1.msra.mxu0 0.0
        %293 = vmatprep.subr.mxu0 0.0
        %294 = vmatpush1.msra.mxu0 0.0
        %295 = vmatprep.subr.mxu0 0.0
        %296 = vmatpush1.msra.mxu0 0.0
        %297 = vmatprep.subr.mxu0 0.0
        %298 = vmatpush1.msra.mxu0 0.0
        %299 = vmatprep.subr.mxu0 0.0
        %300 = vmatpush1.msra.mxu0 0.0
        %301 = vmatprep.subr.mxu0 0.0
        %302 = vmatpush1.msra.mxu0 0.0
        %303 = vmatprep.subr.mxu0 0.0
        %304 = vmatpush1.msra.mxu0 0.0
        %305 = vmatprep.subr.mxu0 0.0
        %306 = vmatpush1.msra.mxu0 0.0
        %307 = vmatprep.subr.mxu0 0.0
        %308 = vmatpush1.msra.mxu0 0.0
        %309 = vmatprep.subr.mxu0 0.0
        %310 = vmatpush1.msra.mxu0 0.0
        %311 = vmatprep.subr.mxu0 0.0
        %312 = vmatpush1.msra.mxu0 0.0
        %313 = vmatprep.subr.mxu0 0.0
        %314 = vmatpush1.msra.mxu0 0.0
        %315 = vmatprep.mubr.f32.mxu0 0.0
        %316 = vmatmul.mubr.f32.gmra.mrb[0].mxu0 %v246
        %v317 = vpop.f32.mrb[0].mxu0
        %v318 = vadd.f32 0.0, %v317
        %v319 = vpop.f32.mrb[0].mxu0
        %v320 = vadd.f32 0.0, %v319
        %321 = vmatprep.mubr.f32.mxu0 0.0
        %322 = vmatmul.mubr.f32.gmra.mrb[0].mxu0 %v249
        %v323 = vpop.f32.mrb[0].mxu0
        %v324 = vadd.f32 0.0, %v323
        %v325 = vpop.f32.mrb[0].mxu0
        %v326 = vadd.f32 0.0, %v325
        %327 = vdwg.mxu0
        %328 = vmatprep.subr.mxu0 0.0
        %329 = vmatpush1.msra.mxu0 %v222
        %330 = vmatprep.subr.mxu0 0.0
        %331 = vmatpush1.msra.mxu0 %v225
        %332 = vmatprep.subr.mxu0 0.0
        %333 = vmatpush1.msra.mxu0 %v228
        %334 = vmatprep.subr.mxu0 0.0
        %335 = vmatpush1.msra.mxu0 %v231
        %336 = vmatprep.subr.mxu0 0.0
        %337 = vmatpush1.msra.mxu0 %v234
        %338 = vmatprep.subr.mxu0 0.0
        %339 = vmatpush1.msra.mxu0 %v237
        %340 = vmatprep.subr.mxu0 0.0
        %341 = vmatpush1.msra.mxu0 %v240
        %342 = vmatprep.subr.mxu0 0.0
        %343 = vmatpush1.msra.mxu0 %v243
        %344 = vmatprep.subr.mxu0 0.0
        %345 = vmatpush1.msra.mxu0 0.0
        %346 = vmatprep.subr.mxu0 0.0
        %347 = vmatpush1.msra.mxu0 0.0
        %348 = vmatprep.subr.mxu0 0.0
        %349 = vmatpush1.msra.mxu0 0.0
        %350 = vmatprep.subr.mxu0 0.0
        %351 = vmatpush1.msra.mxu0 0.0
        %352 = vmatprep.subr.mxu0 0.0
        %353 = vmatpush1.msra.mxu0 0.0
        %354 = vmatprep.subr.mxu0 0.0
        %355 = vmatpush1.msra.mxu0 0.0
        %356 = vmatprep.subr.mxu0 0.0
        %357 = vmatpush1.msra.mxu0 0.0
        %358 = vmatprep.subr.mxu0 0.0
        %359 = vmatpush1.msra.mxu0 0.0
        %360 = vmatprep.subr.mxu0 0.0
        %361 = vmatpush1.msra.mxu0 0.0
        %362 = vmatprep.subr.mxu0 0.0
        %363 = vmatpush1.msra.mxu0 0.0
        %364 = vmatprep.subr.mxu0 0.0
        %365 = vmatpush1.msra.mxu0 0.0
        %366 = vmatprep.subr.mxu0 0.0
        %367 = vmatpush1.msra.mxu0 0.0
        %368 = vmatprep.subr.mxu0 0.0
        %369 = vmatpush1.msra.mxu0 0.0
        %370 = vmatprep.subr.mxu0 0.0
        %371 = vmatpush1.msra.mxu0 0.0
        %372 = vmatprep.subr.mxu0 0.0
        %373 = vmatpush1.msra.mxu0 0.0
        %374 = vmatprep.subr.mxu0 0.0
        %375 = vmatpush1.msra.mxu0 0.0
        %376 = vmatprep.subr.mxu0 0.0
        %377 = vmatpush1.msra.mxu0 0.0
        %378 = vmatprep.subr.mxu0 0.0
        %379 = vmatpush1.msra.mxu0 0.0
        %380 = vmatprep.subr.mxu0 0.0
        %381 = vmatpush1.msra.mxu0 0.0
        %382 = vmatprep.subr.mxu0 0.0
        %383 = vmatpush1.msra.mxu0 0.0
        %384 = vmatprep.subr.mxu0 0.0
        %385 = vmatpush1.msra.mxu0 0.0
        %386 = vmatprep.subr.mxu0 0.0
        %387 = vmatpush1.msra.mxu0 0.0
        %388 = vmatprep.subr.mxu0 0.0
        %389 = vmatpush1.msra.mxu0 0.0
        %390 = vmatprep.subr.mxu0 0.0
        %391 = vmatpush1.msra.mxu0 0.0
        %392 = vmatprep.mubr.f32.mxu0 0.0
        %393 = vmatmul.mubr.f32.gmra.mrb[0].mxu0 %v246
        %v394 = vpop.f32.mrb[0].mxu0
        %v395 = vadd.f32 0.0, %v394
        %v396 = vpop.f32.mrb[0].mxu0
        %397 = vmatprep.mubr.f32.mxu0 0.0
        %398 = vmatmul.mubr.f32.gmra.mrb[0].mxu0 %v249
        %v399 = vpop.f32.mrb[0].mxu0
        %v400 = vadd.f32 0.0, %v399
        %v401 = vpop.f32.mrb[0].mxu0
        %402 = vdwg.mxu0
        %v403 = vlaneseq
        %v404 = vshrl.u32 %v403, 7
        %v405 = vadd.s32 %v404, 8
        %vm406 = vcmp.lt.s32.totalorder %v404, 0
        %v407 = vsub.s32 0, %v404
        %v408 = vsel %vm406, %v407, %v404
        %v409 = vshrl.u32 %v408, 4
        %v410 = vand.u32 %v408, 15
        %v411 = vsub.s32 0, %v410
        %v412 = vsel %vm406, %v411, %v410
        %vm413 = vcmp.lt.s32.totalorder %v405, 0
        %v414 = vsub.s32 0, %v405
        %v415 = vsel %vm413, %v414, %v405
        %v416 = vshrl.u32 %v415, 4
        %v417 = vand.u32 %v415, 15
        %v418 = vsub.s32 0, %v417
        %v419 = vsel %vm413, %v418, %v417
        %vm420 = vcmp.ne.s32.totalorder %v412, 0
        %vm421 = vcmp.ne.s32.totalorder %v419, 0
        %vm422 = vcmp.lt.s32.totalorder %v412, 0
        %vm423 = vcmp.lt.s32.totalorder %v419, 0
        %vm424 = vmand %vm422, %vm420
        %vm425 = vmand %vm423, %vm421
        %v426 = vadd.s32 %v412, 16
        %v427 = vadd.s32 %v419, 16
        %v428 = vsel %vm424, %v426, %v412
        %v429 = vsel %vm425, %v427, %v419
        %vm430 = vcmp.eq.s32.totalorder %v428, 0
        %vm431 = vcmp.eq.s32.totalorder %v429, 0
        %vm432 = vcmp.eq.s32.totalorder %v428, 15
        %vm433 = vcmp.eq.s32.totalorder %v429, 15
        %v434 = vrot.slane %v318, 7
        %v435 = vrot.slane %v324, 7
        %vm436 = vcmp.lt.s32.totalorder %v404, 1
        %v437 = vsel %vm436, %v434, %v435
        %v438 = vsel %vm436, %v435, %v434
        %v439 = vsel %vm430, 1, 0
        %v440 = vsel %vm431, 1, 0
        %vm441 = vcmp.eq.s32.totalorder %v439, 1
        %vm442 = vcmp.eq.s32.totalorder %v440, 1
        %v443 = vsel %vm441, 0.0, %v438
        %v444 = vsel %vm442, 0.0, %v437
        %v445 = vrot.slane %v395, 1
        %v446 = vrot.slane %v400, 1
        %vm447 = vcmp.lt.s32.totalorder %v404, 7
        %v448 = vsel %vm447, %v445, %v446
        %v449 = vsel %vm447, %v446, %v445
        %v450 = vsel %vm432, 1, 0
        %v451 = vsel %vm433, 1, 0
        %vm452 = vcmp.eq.s32.totalorder %v450, 1
        %vm453 = vcmp.eq.s32.totalorder %v451, 1
        %v454 = vsel %vm452, 0.0, %v448
        %v455 = vsel %vm453, 0.0, %v449
        %v456 = vld [vmem:[#allocation7] sm:$0x7]
        %v457 = vlaneseq
        %v458 = vshrl.u32 %v457, 7
        %v459 = vsub.s32 2, %v458
        %v460 = vrot.slane %v456, %v459
        %v461 = vlaneseq
        %v462 = vshrl.u32 %v461, 7
        %v463 = vsub.s32 1, %v462
        %v464 = vrot.slane %v456, %v463
        %v465 = vsel %vm452, %v460, %v464
        %v466 = vsel %vm453, %v460, %v464
        %v467 = vlaneseq
        %v468 = vshrl.u32 %v467, 7
        %v469 = vsub.s32 0, %v468
        %v470 = vrot.slane %v456, %v469
        %v471 = vsel %vm441, %v470, %v465
        %v472 = vsel %vm442, %v470, %v466
        %v473 = vadd.f32 %v320, %v443
        %v474 = vadd.f32 %v326, %v444
        %v475 = vadd.f32 %v473, %v454
        %v476 = vadd.f32 %v474, %v455
        %v477 = vadd.f32 %v475, %v471
        %v478 = vadd.f32 %v476, %v472
        %v479 = vxor.u32 %v477, 2147483648
        %v480 = vxor.u32 %v478, 2147483648
        %v481 = vmul.f32 %v479, 1.442695
        %v482 = vpow.pop %v481
        %v483 = vmul.f32 %v480, 1.442695
        %v484 = vpow.pop %v483
        %v485 = vadd.f32 %v482, 1.0
        %v486 = vadd.f32 %v484, 1.0
        %v487 = vrcp.pop %v485
        %v488 = vmul.f32 1.0, %v487
        %v489 = vrcp.pop %v486
        %v490 = vmul.f32 1.0, %v489
        %491 = vst [vmem:[%s215] sm:$0xff] %v488
        %492 = vst [vmem:[%s215 + $0x8] sm:$0xff] %v490
        %s493 = sand.u32 %s97, 1
        %s494 = scalar_lea.sflag [#allocation4], %s493
        %s495 = sand.u32 %s97, 1
        %s496 = smul.addr %s495, 16
        %s497 = scalar_lea.vmem [#allocation8], %s496
        // Predicated region
        $region45: #{forward.1} parent=31 // pred_check
          %p498 = pneg %p107
        $region46: #{forward.1} parent=31 // pred_check_branch
          %500 = sbr.rel (%p498) target = $region48
        $region47: #{forward.1} parent=31 // pred_region
          %s501 = smul.u32 2, %s21
          %s503 = ssub.s32 256, 256
          %504 = vsyncadd %s494, %s503
          %s505 = smul.addr %s501, 128
          %s506 = scalar_lea.hbm %s3, %s505
          %s507 = sshll.u32 %s497, 4
          %s508 = int_to_ptr.vmem [resolvable:$true] %s507
          %513 = dma.vmem_to_hbm [thread:$0]  %s508, 256, %s506, %s494, 128, 128, 8
        $region48: #{forward.1} parent=31 // pred_fallthru
          _
      $region32: #{forward.1} parent=5 // pred_fallthru
        _
      %p514 = scmp.le.s32.totalorder 2, %s16
      // Predicated region
      $region49: #{forward.1} parent=5 // pred_check
        %p515 = pneg %p514
      $region50: #{forward.1} parent=5 // pred_check_branch
        %517 = sbr.rel (%p515) target = $region52
      $region51: #{forward.1} parent=5 // pred_region
        %s518 = ssub.s32 %s16, 2
        // Predicated region
        $region53: #{forward.1} parent=51 // pred_check
          %p519 = pneg %p113
        $region54: #{forward.1} parent=51 // pred_check_branch
          %521 = sbr.rel (%p519) target = $region56
        $region55: #{forward.1} parent=51 // pred_region
          %s522 = sand.u32 %s98, 1
          %s523 = scalar_lea.sflag [#allocation4], %s522
          %s524 = sand.u32 %s98, 1
          %s525 = smul.addr %s524, 16
          %s526 = scalar_lea.vmem [#allocation8], %s525
          %527 = dma.done %s523, 256
        $region56: #{forward.1} parent=51 // pred_fallthru
          _
      $region52: #{forward.1} parent=5 // pred_fallthru
        _
    $region6: #{forward.1} parent=1 // loop_footer
      %s20 = sadd.s32 1, %s16
    $region7: #{forward.1} parent=1 // loop_footer_branch
      %15 = sbr.rel target = $region3
    $region8: #{forward.1} parent=1 // loop_exit
      _
    %528 = vsyncpa [#allocation3], 1
    %s529 = scalar_lea.sflag [#allocation3], 1
    %530 = vsyncpa %s529, 1
    %531 = vsyncpa [#allocation6], 1
    %532 = vsyncpa [#allocation4], 1
    %s533 = scalar_lea.sflag [#allocation4], 1
    %534 = vsyncpa %s533, 1

</llo_original>
